<compile_context>
chip_gen: v5e
topology: v5e:2x2
jax: 0.10.0
libtpu: 0.0.40
codegen_flags: <defaults>
</compile_context>

<pallas_src>
import jax
import jax.numpy as jnp
from jax.experimental import pallas as pl
from jax.experimental.pallas import tpu as pltpu


_VMEM_STEP_BUDGET = 8 * 1024 * 1024   # target VMEM bytes moved/held per grid step
_SMALL_ROWS = 1024                    # below this many packed rows, never force a split


def _adapter_kernel(x_ref, w1_ref, w2_ref, sbias_ref, b2_ref, o_ref):
    # x_ref:    (T, PD)   lane-packed input rows (input dtype)
    # w1_ref:   (PD, PM)  block-diagonal expansion of W1^T, bf16 (VMEM resident)
    # w2_ref:   (PM, PD)  block-diagonal expansion of W2^T, bf16 (VMEM resident)
    # sbias_ref:(1, PM)   memory_score_bias repeated per packed sub-row, f32
    # b2_ref:   (1, PD)   w_2.bias tiled per packed sub-row, f32
    x = x_ref[...].astype(jnp.bfloat16)

    # score = x @ W1^T  (lane-packed; contraction over RHS dim 0; f32 accumulation)
    score = jax.lax.dot_general(
        x, w1_ref[...],
        dimension_numbers=(((1,), (0,)), ((), ())),
        preferred_element_type=jnp.float32,
    )                                               # (T, PM), f32
    score = jnp.maximum(score + sbias_ref[...], 0.0)  # bias + relu, f32 (v5e-safe)
    # TODO(synk): nn.Dropout is identity in eval mode; training-mode dropout not implemented.

    # out = relu(score) @ W2^T  (lane-packed)
    out = jax.lax.dot_general(
        score.astype(jnp.bfloat16), w2_ref[...],
        dimension_numbers=(((1,), (0,)), ((), ())),
        preferred_element_type=jnp.float32,
    )                                               # (T, PD), f32
    o_ref[...] = (out + b2_ref[...]).astype(o_ref.dtype)


def _round_up(x, m):
    return ((x + m - 1) // m) * m


def _num_tensorcores():
    """TensorCores addressed by one device: 1 on v5e/v6e, 2 on v7x (best effort)."""
    try:
        dev = jax.devices()[0]
        n = getattr(dev, "num_cores", None)
        if n is not None:
            return max(1, int(n))
        kind = str(getattr(dev, "device_kind", "")).lower()
        return 2 if "v7" in kind else 1
    except Exception:
        return 1


def _choose_row_tile(rows_p, n_cores, max_tile):
    """Pick the row tile (in packed rows).

    Single-core chips: maximal tile (the grid is a serial loop there, extra
    steps just cost ~0.35 us each).  Dual-core chips (v7x): force an even
    number of steps >= 4 when there is enough work, so each core gets >= 2
    pipelined steps and the 'parallel' axis shards across both cores.
    """
    if rows_p <= max_tile and (n_cores <= 1 or rows_p <= _SMALL_ROWS):
        return rows_p                              # single full-extent block
    if n_cores <= 1:
        return max_tile
    steps = pl.cdiv(rows_p, max_tile)
    steps = max(4, steps + (steps % 2))            # even, >= 4
    return min(max_tile, max(8, _round_up(pl.cdiv(rows_p, steps), 8)))


@jax.jit
def single_head_ffn_adapter(x, w1, w2, score_bias, b2):
    """x: (A, B, D). w1: (M, D). w2: (D, M). score_bias: (1, M). b2: (D,)."""
    A, B, D = x.shape
    M = w1.shape[0]
    rows = A * B

    # Lane-packing factor: fold P = 128//D consecutive rows into one 128-wide
    # row so loads/stores are lane-dense.  Pure contiguous reshape -> free.
    if D % 128 != 0 and 128 % D == 0 and rows % (128 // D) == 0:
        P = 128 // D
    else:
        P = 1                                      # already lane-dense or not packable
    PD, PM = P * D, P * M
    rows_p = rows // P
    x_p = x.reshape(rows_p, PD)

    # Block-diagonal weight expansion (built once in the wrapper; tiny, exact):
    #   w1p[k*D+d, m*P+K] = w1[m, d] * (k == K)   ->  score_p = x_p @ w1p
    #   w2p[m*P+K, k*D+d] = w2[d, m] * (K == k)   ->  out_p   = relu(score_p) @ w2p
    # With P == 1 this degenerates to plain W1^T / W2^T (standard (K, N) layout).
    eye = jnp.eye(P, dtype=w1.dtype)
    w1p = jnp.einsum("md,kK->kdmK", w1, eye).reshape(PD, PM).astype(jnp.bfloat16)
    w2p = jnp.einsum("dm,Kk->mKkd", w2, eye).reshape(PM, PD).astype(jnp.bfloat16)
    sbias_p = jnp.repeat(score_bias.reshape(1, M).astype(jnp.float32), P, axis=1)  # (1, PM)
    b2_p = jnp.tile(b2.reshape(1, D).astype(jnp.float32), (1, P))                  # (1, PD)

    itemsize = jnp.dtype(x.dtype).itemsize
    # Per-packed-row VMEM: double-buffered x + out blocks, f32 + bf16 score.
    row_bytes = 2 * PD * itemsize + 2 * PD * itemsize + PM * 4 + PM * 2
    max_tile = max(8, (_VMEM_STEP_BUDGET // row_bytes) // 8 * 8)
    tile = _choose_row_tile(rows_p, _num_tensorcores(), max_tile)
    grid = (pl.cdiv(rows_p, tile),)                # partial last block masked by Pallas

    cost = pl.CostEstimate(
        flops=4 * rows_p * PD * PM,                # two (expanded) matmuls
        transcendentals=0,
        bytes_accessed=(rows_p * PD * itemsize * 2          # x read + out write
                        + (w1p.size + w2p.size) * 2          # bf16 weights
                        + (sbias_p.size + b2_p.size) * 4),
    )

    out_p = pl.pallas_call(
        _adapter_kernel,
        out_shape=jax.ShapeDtypeStruct((rows_p, PD), x.dtype),
        grid_spec=pltpu.PrefetchScalarGridSpec(
            num_scalar_prefetch=0,
            grid=grid,
            in_specs=[
                pl.BlockSpec((tile, PD), lambda i: (i, 0)),   # lane-packed x row tile
                pl.BlockSpec((PD, PM), lambda i: (0, 0)),     # expanded W1 (VMEM resident)
                pl.BlockSpec((PM, PD), lambda i: (0, 0)),     # expanded W2 (VMEM resident)
                pl.BlockSpec((1, PM), lambda i: (0, 0)),      # memory_score_bias (packed)
                pl.BlockSpec((1, PD), lambda i: (0, 0)),      # w_2.bias (packed)
            ],
            out_specs=pl.BlockSpec((tile, PD), lambda i: (i, 0)),
        ),
        compiler_params=pltpu.CompilerParams(
            dimension_semantics=("parallel",),
            vmem_limit_bytes=32 * 1024 * 1024,
        ),
        cost_estimate=cost,
    )(x_p, w1p, w2p, sbias_p, b2_p)

    return out_p.reshape(A, B, D)


def _reference(x, w1, w2, score_bias, b2):
    # Mirrors the PyTorch forward exactly (fixed per review):
    #   score = einsum('md,abd->abm', W1, x) + bias ; relu
    #   out   = einsum('dm,abm->abd', W2, score) + b2      (== score @ W2^T + b2)
    score = jnp.einsum("md,abd->abm", w1, x) + score_bias
    score = jnp.maximum(score, 0.0)
    return jnp.einsum("dm,abm->abd", w2, score) + b2


if __name__ == "__main__":
    # Small shapes consistent with the module: batch=2, seq=16, input_dim=32,
    # memory_count=64.
    A, B, D, M = 2, 16, 32, 64
    key = jax.random.PRNGKey(0)
    kx, k1, k2, kb, ksb = jax.random.split(key, 5)

    x = jax.random.normal(kx, (A, B, D), dtype=jnp.float32)
    # Deterministic synthetic parameters (mimic nn.Linear init scales).
    w1 = jax.random.normal(k1, (M, D), dtype=jnp.float32) * (1.0 / jnp.sqrt(D))
    w2 = jax.random.normal(k2, (D, M), dtype=jnp.float32) * (1.0 / jnp.sqrt(M))
    b2 = jax.random.normal(kb, (D,), dtype=jnp.float32) * 0.01
    score_bias = jax.random.normal(ksb, (1, M), dtype=jnp.float32)

    out = single_head_ffn_adapter(x, w1, w2, score_bias, b2)
    out = jax.block_until_ready(out)

    ref = _reference(x, w1, w2, score_bias, b2)
    assert out.shape == (A, B, D)
    max_diff = float(jnp.max(jnp.abs(out - ref)))
    # bf16 MXU operands with f32 accumulation -> bf16-level tolerance vs f32 ref.
    assert jnp.allclose(out, ref, atol=5e-2, rtol=5e-2), (
        "mismatch vs reference, max abs diff = %e" % max_diff)
    print("KERNEL_OK")
</pallas_src>

<mosaic_0001>
module attributes {stable_mosaic.version = 11 : i64} {
  func.func @_adapter_kernel(%arg0: i32, %arg1: memref<8x128xf32, #tpu.memory_space<vmem>>, %arg2: memref<128x256xbf16, #tpu.memory_space<vmem>>, %arg3: memref<256x128xbf16, #tpu.memory_space<vmem>>, %arg4: memref<1x256xf32, #tpu.memory_space<vmem>>, %arg5: memref<1x128xf32, #tpu.memory_space<vmem>>, %arg6: memref<8x128xf32, #tpu.memory_space<vmem>>) attributes {dimension_semantics = [#tpu.dimension_semantics<parallel>], iteration_bounds = array<i64: 1>, scalar_prefetch = 0 : i64, scratch_operands = 0 : i64, tpu.core_type = #tpu.core_type<tc>, window_params = [{transform_indices = @transform_0, window_bounds = array<i64: 8, 128>}, {pipeline_mode = #tpu.pipeline_mode<synchronous>, transform_indices = @transform_1, window_bounds = array<i64: 128, 256>}, {pipeline_mode = #tpu.pipeline_mode<synchronous>, transform_indices = @transform_2, window_bounds = array<i64: 256, 128>}, {pipeline_mode = #tpu.pipeline_mode<synchronous>, transform_indices = @transform_3, window_bounds = array<i64: 1, 256>}, {pipeline_mode = #tpu.pipeline_mode<synchronous>, transform_indices = @transform_4, window_bounds = array<i64: 1, 128>}, {transform_indices = @transform_5, window_bounds = array<i64: 8, 128>}]} {
    %c0 = arith.constant 0 : index
    %c0_0 = arith.constant 0 : index
    %0 = vector.load %arg1[%c0, %c0_0] : memref<8x128xf32, #tpu.memory_space<vmem>>, vector<8x128xf32>
    %1 = arith.truncf %0 : vector<8x128xf32> to vector<8x128xbf16>
    %c0_1 = arith.constant 0 : index
    %c0_2 = arith.constant 0 : index
    %2 = vector.load %arg2[%c0_1, %c0_2] : memref<128x256xbf16, #tpu.memory_space<vmem>>, vector<128x256xbf16>
    %cst = arith.constant dense<0.000000e+00> : vector<8x256xf32>
    %3 = tpu.matmul %1, %2, %cst {dimension_numbers = #tpu.dot_dimension_numbers<[1], [0], [0], [1], [0, 0, 1, 1], [], []>} : vector<8x128xbf16>, vector<128x256xbf16>, vector<8x256xf32> -> vector<8x256xf32>
    %c0_3 = arith.constant 0 : index
    %c0_4 = arith.constant 0 : index
    %4 = vector.load %arg4[%c0_3, %c0_4] : memref<1x256xf32, #tpu.memory_space<vmem>>, vector<1x256xf32>
    %5 = vector.broadcast %4 : vector<1x256xf32> to vector<8x256xf32>
    %6 = arith.addf %3, %5 : vector<8x256xf32>
    %cst_5 = arith.constant 0.000000e+00 : f32
    %7 = vector.broadcast %cst_5 : f32 to vector<8x256xf32>
    %8 = arith.maximumf %6, %7 : vector<8x256xf32>
    %9 = arith.truncf %8 : vector<8x256xf32> to vector<8x256xbf16>
    %c0_6 = arith.constant 0 : index
    %c0_7 = arith.constant 0 : index
    %10 = vector.load %arg3[%c0_6, %c0_7] : memref<256x128xbf16, #tpu.memory_space<vmem>>, vector<256x128xbf16>
    %cst_8 = arith.constant dense<0.000000e+00> : vector<8x128xf32>
    %11 = tpu.matmul %9, %10, %cst_8 {dimension_numbers = #tpu.dot_dimension_numbers<[1], [0], [0], [1], [0, 0, 1, 1], [], []>} : vector<8x256xbf16>, vector<256x128xbf16>, vector<8x128xf32> -> vector<8x128xf32>
    %c0_9 = arith.constant 0 : index
    %c0_10 = arith.constant 0 : index
    %12 = vector.load %arg5[%c0_9, %c0_10] : memref<1x128xf32, #tpu.memory_space<vmem>>, vector<1x128xf32>
    %13 = vector.broadcast %12 : vector<1x128xf32> to vector<8x128xf32>
    %14 = arith.addf %11, %13 : vector<8x128xf32>
    %c0_11 = arith.constant 0 : index
    %c0_12 = arith.constant 0 : index
    %15 = vector.load %arg6[%c0_11, %c0_12] : memref<8x128xf32, #tpu.memory_space<vmem>>, vector<8x128xf32>
    tpu.vector_store %arg6[%c0_11, %c0_12], %14 {strides = array<i32>} : memref<8x128xf32, #tpu.memory_space<vmem>>, vector<8x128xf32>,
    return
  }
  func.func @transform_0(%arg0: i32) -> (i32, i32) {
    %c0_i32 = arith.constant 0 : i32
    %c0_i32_0 = arith.constant 0 : i32
    return %arg0, %c0_i32 : i32, i32
  }
  func.func @transform_1(%arg0: i32) -> (i32, i32) {
    %c0_i32 = arith.constant 0 : i32
    %c0_i32_0 = arith.constant 0 : i32
    %c0_i32_1 = arith.constant 0 : i32
    return %c0_i32, %c0_i32_0 : i32, i32
  }
  func.func @transform_2(%arg0: i32) -> (i32, i32) {
    %c0_i32 = arith.constant 0 : i32
    %c0_i32_0 = arith.constant 0 : i32
    %c0_i32_1 = arith.constant 0 : i32
    return %c0_i32, %c0_i32_0 : i32, i32
  }
  func.func @transform_3(%arg0: i32) -> (i32, i32) {
    %c0_i32 = arith.constant 0 : i32
    %c0_i32_0 = arith.constant 0 : i32
    %c0_i32_1 = arith.constant 0 : i32
    return %c0_i32, %c0_i32_0 : i32, i32
  }
  func.func @transform_4(%arg0: i32) -> (i32, i32) {
    %c0_i32 = arith.constant 0 : i32
    %c0_i32_0 = arith.constant 0 : i32
    %c0_i32_1 = arith.constant 0 : i32
    return %c0_i32, %c0_i32_0 : i32, i32
  }
  func.func @transform_5(%arg0: i32) -> (i32, i32) {
    %c0_i32 = arith.constant 0 : i32
    %c0_i32_0 = arith.constant 0 : i32
    return %arg0, %c0_i32 : i32, i32
  }
}

</mosaic_0001>

<llo_original>
// kernel: single_head_ffn_adapter.1
$region0: #{single_head_ffn_adapter.1}
  #allocation0 [shape = 'u32[]', space=smem, size = 0x4, offset = 0x4, fixed_abs, tag = 'smem constant byte address 0x4 - core index']
  #allocation1 [shape = 'u32[72,128]{1,0:T(1,128)}', space=vmem, size = 0x9000, scoped, tag = 'internal scratch']
  %s0 = inlined_call_operand.vmem [shape: f32[8,128], index: 0, kind: input, shape index: {}]
  %s1 = inlined_call_operand.vmem [shape: bf16[128,256], index: 1, kind: input, shape index: {}]
  %s2 = inlined_call_operand.vmem [shape: bf16[256,128], index: 2, kind: input, shape index: {}]
  %s3 = inlined_call_operand.vmem [shape: f32[1,256], index: 3, kind: input, shape index: {}]
  %s4 = inlined_call_operand.vmem [shape: f32[1,128], index: 4, kind: input, shape index: {}]
  %s5 = inlined_call_operand.vmem [shape: f32[8,128], index: 5, kind: output, shape index: {}]
  %s6 = sld [smem:[#allocation0]]
  $region30: #{single_head_ffn_adapter.1} parent=0
    _
  %s8 = ssub.s32 1, %s6
  %s9 = scalar_select 0, %s8, %s6
  // Predicated region
  $region2: #{single_head_ffn_adapter.1} parent=0 // pred_check
    _
  $region3: #{single_head_ffn_adapter.1} parent=0 // pred_check_branch
    %11 = sbr.rel (0) target = $region5
  $region4: #{single_head_ffn_adapter.1} parent=0 // pred_region
    _
  $region5: #{single_head_ffn_adapter.1} parent=0 // pred_fallthru
    _
  // Predicated region
  $region6: #{single_head_ffn_adapter.1} parent=0 // pred_check
    _
  $region7: #{single_head_ffn_adapter.1} parent=0 // pred_check_branch
    %13 = sbr.rel (0) target = $region9
  $region8: #{single_head_ffn_adapter.1} parent=0 // pred_region
    _
  $region9: #{single_head_ffn_adapter.1} parent=0 // pred_fallthru
    _
  // Predicated region
  $region10: #{single_head_ffn_adapter.1} parent=0 // pred_check
    _
  $region11: #{single_head_ffn_adapter.1} parent=0 // pred_check_branch
    %15 = sbr.rel (0) target = $region13
  $region12: #{single_head_ffn_adapter.1} parent=0 // pred_region
    _
  $region13: #{single_head_ffn_adapter.1} parent=0 // pred_fallthru
    _
  // Predicated region
  $region14: #{single_head_ffn_adapter.1} parent=0 // pred_check
    _
  $region15: #{single_head_ffn_adapter.1} parent=0 // pred_check_branch
    %17 = sbr.rel (0) target = $region17
  $region16: #{single_head_ffn_adapter.1} parent=0 // pred_region
    _
  $region17: #{single_head_ffn_adapter.1} parent=0 // pred_fallthru
    _
  // Predicated region
  $region18: #{single_head_ffn_adapter.1} parent=0 // pred_check
    _
  $region19: #{single_head_ffn_adapter.1} parent=0 // pred_check_branch
    %19 = sbr.rel (0) target = $region21
  $region20: #{single_head_ffn_adapter.1} parent=0 // pred_region
    _
  $region21: #{single_head_ffn_adapter.1} parent=0 // pred_fallthru
    _
  %v20 = vld [vmem:[%s0] sm:$0xff]
  %v21 = vpack.c.bf16 %v20, %v20
  %v22 = vld [vmem:[%s1] sm:$0xff]
  %v23 = vld [vmem:[%s1 + $0x8] sm:$0xff]
  %v24 = vld [vmem:[%s1 + $0x10] sm:$0xff]
  %v25 = vld [vmem:[%s1 + $0x18] sm:$0xff]
  %v26 = vld [vmem:[%s1 + $0x20] sm:$0xff]
  %v27 = vld [vmem:[%s1 + $0x28] sm:$0xff]
  %v28 = vld [vmem:[%s1 + $0x30] sm:$0xff]
  %v29 = vld [vmem:[%s1 + $0x38] sm:$0xff]
  %v30 = vld [vmem:[%s1 + $0x40] sm:$0xff]
  %v31 = vld [vmem:[%s1 + $0x48] sm:$0xff]
  %v32 = vld [vmem:[%s1 + $0x50] sm:$0xff]
  %v33 = vld [vmem:[%s1 + $0x58] sm:$0xff]
  %v34 = vld [vmem:[%s1 + $0x60] sm:$0xff]
  %v35 = vld [vmem:[%s1 + $0x68] sm:$0xff]
  %v36 = vld [vmem:[%s1 + $0x70] sm:$0xff]
  %v37 = vld [vmem:[%s1 + $0x78] sm:$0xff]
  %v38 = vld [vmem:[%s3] sm:$0x3]
  %v40 = vperm.slane %v38, 0
  %v41 = vperm.slane %v38, 1
  %v60 = vunpack.c.l.b16 %v22
  %v61 = vunpack.c.h.b16 %v22
  %v62 = vunpack.c.l.b16 %v23
  %v63 = vunpack.c.h.b16 %v23
  %v64 = vunpack.c.l.b16 %v24
  %v65 = vunpack.c.h.b16 %v24
  %v66 = vunpack.c.l.b16 %v25
  %v67 = vunpack.c.h.b16 %v25
  %v68 = vunpack.c.l.b16 %v26
  %v69 = vunpack.c.h.b16 %v26
  %v70 = vunpack.c.l.b16 %v27
  %v71 = vunpack.c.h.b16 %v27
  %v72 = vunpack.c.l.b16 %v28
  %v73 = vunpack.c.h.b16 %v28
  %v74 = vunpack.c.l.b16 %v29
  %v75 = vunpack.c.h.b16 %v29
  %v76 = vunpack.c.l.b16 %v30
  %v77 = vunpack.c.h.b16 %v30
  %v78 = vunpack.c.l.b16 %v31
  %v79 = vunpack.c.h.b16 %v31
  %v80 = vunpack.c.l.b16 %v32
  %v81 = vunpack.c.h.b16 %v32
  %v82 = vunpack.c.l.b16 %v33
  %v83 = vunpack.c.h.b16 %v33
  %v84 = vunpack.c.l.b16 %v34
  %v85 = vunpack.c.h.b16 %v34
  %v86 = vunpack.c.l.b16 %v35
  %v87 = vunpack.c.h.b16 %v35
  %v88 = vunpack.c.l.b16 %v36
  %v89 = vunpack.c.h.b16 %v36
  %v90 = vunpack.c.l.b16 %v37
  %v91 = vunpack.c.h.b16 %v37
  %v92 = vpack.c.b16 %v62, %v60
  %v93 = vpack.c.b16 %v63, %v61
  %v94 = vpack.c.b16 %v66, %v64
  %v95 = vpack.c.b16 %v67, %v65
  %v96 = vpack.c.b16 %v70, %v68
  %v97 = vpack.c.b16 %v71, %v69
  %v98 = vpack.c.b16 %v74, %v72
  %v99 = vpack.c.b16 %v75, %v73
  %v100 = vpack.c.b16 %v78, %v76
  %v101 = vpack.c.b16 %v79, %v77
  %v102 = vpack.c.b16 %v82, %v80
  %v103 = vpack.c.b16 %v83, %v81
  %v104 = vpack.c.b16 %v86, %v84
  %v105 = vpack.c.b16 %v87, %v85
  %v106 = vpack.c.b16 %v90, %v88
  %v107 = vpack.c.b16 %v91, %v89
  %124 = vmatpush.bf16.msra.mxu0 %v106
  %125 = vmatpush.bf16.msra.mxu0 %v104
  %126 = vmatpush.bf16.msra.mxu0 %v102
  %127 = vmatpush.bf16.msra.mxu0 %v100
  %128 = vmatpush.bf16.msra.mxu0 %v98
  %129 = vmatpush.bf16.msra.mxu0 %v96
  %130 = vmatpush.bf16.msra.mxu0 %v94
  %131 = vmatpush.bf16.msra.mxu0 %v92
  %132 = vmatmul.bf16.gmra.mxu0 %v21
  %v133 = vpop.f32.mrf.mxu0
  %v134 = vadd.f32 %v40, %v133
  %v135 = vpop.f32.mrf.mxu0
  %136 = vdwg.mxu0
  %137 = vmatpush.bf16.msra.mxu0 %v107
  %138 = vmatpush.bf16.msra.mxu0 %v105
  %139 = vmatpush.bf16.msra.mxu0 %v103
  %140 = vmatpush.bf16.msra.mxu0 %v101
  %141 = vmatpush.bf16.msra.mxu0 %v99
  %142 = vmatpush.bf16.msra.mxu0 %v97
  %143 = vmatpush.bf16.msra.mxu0 %v95
  %144 = vmatpush.bf16.msra.mxu0 %v93
  %145 = vmatmul.bf16.gmra.mxu0 %v21
  %v146 = vpop.f32.mrf.mxu0
  %v147 = vadd.f32 %v41, %v146
  %v148 = vpop.f32.mrf.mxu0
  %149 = vdwg.mxu0
  %v150 = vmax.f32 %v134, 0.0
  %v151 = vmax.f32 %v147, 0.0
  %v152 = vpack.c.bf16 %v150, %v150
  %v153 = vpack.c.bf16 %v151, %v151
  %v154 = vld [vmem:[%s2] sm:$0xf]
  %v155 = vld [vmem:[%s2 + $0x4] sm:$0xf]
  %v156 = vld [vmem:[%s2 + $0x8] sm:$0xf]
  %v157 = vld [vmem:[%s2 + $0xc] sm:$0xf]
  %v158 = vld [vmem:[%s2 + $0x10] sm:$0xf]
  %v159 = vld [vmem:[%s2 + $0x14] sm:$0xf]
  %v160 = vld [vmem:[%s2 + $0x18] sm:$0xf]
  %v161 = vld [vmem:[%s2 + $0x1c] sm:$0xf]
  %v162 = vld [vmem:[%s2 + $0x20] sm:$0xf]
  %v163 = vld [vmem:[%s2 + $0x24] sm:$0xf]
  %v164 = vld [vmem:[%s2 + $0x28] sm:$0xf]
  %v165 = vld [vmem:[%s2 + $0x2c] sm:$0xf]
  %v166 = vld [vmem:[%s2 + $0x30] sm:$0xf]
  %v167 = vld [vmem:[%s2 + $0x34] sm:$0xf]
  %v168 = vld [vmem:[%s2 + $0x38] sm:$0xf]
  %v169 = vld [vmem:[%s2 + $0x3c] sm:$0xf]
  %v170 = vld [vmem:[%s2 + $0x40] sm:$0xf]
  %v171 = vld [vmem:[%s2 + $0x44] sm:$0xf]
  %v172 = vld [vmem:[%s2 + $0x48] sm:$0xf]
  %v173 = vld [vmem:[%s2 + $0x4c] sm:$0xf]
  %v174 = vld [vmem:[%s2 + $0x50] sm:$0xf]
  %v175 = vld [vmem:[%s2 + $0x54] sm:$0xf]
  %v176 = vld [vmem:[%s2 + $0x58] sm:$0xf]
  %v177 = vld [vmem:[%s2 + $0x5c] sm:$0xf]
  %v178 = vld [vmem:[%s2 + $0x60] sm:$0xf]
  %v179 = vld [vmem:[%s2 + $0x64] sm:$0xf]
  %v180 = vld [vmem:[%s2 + $0x68] sm:$0xf]
  %v181 = vld [vmem:[%s2 + $0x6c] sm:$0xf]
  %v182 = vld [vmem:[%s2 + $0x70] sm:$0xf]
  %v183 = vld [vmem:[%s2 + $0x74] sm:$0xf]
  %v184 = vld [vmem:[%s2 + $0x78] sm:$0xf]
  %v185 = vld [vmem:[%s2 + $0x7c] sm:$0xf]
  %v186 = vld [vmem:[%s4] sm:$0x1]
  %v188 = vperm.slane %v186, 0
  %v222 = vunpack.c.l.b16 %v154
  %v223 = vunpack.c.l.b16 %v155
  %v224 = vunpack.c.l.b16 %v156
  %v225 = vunpack.c.l.b16 %v157
  %v226 = vunpack.c.l.b16 %v158
  %v227 = vunpack.c.l.b16 %v159
  %v228 = vunpack.c.l.b16 %v160
  %v229 = vunpack.c.l.b16 %v161
  %v230 = vunpack.c.l.b16 %v162
  %v231 = vunpack.c.l.b16 %v163
  %v232 = vunpack.c.l.b16 %v164
  %v233 = vunpack.c.l.b16 %v165
  %v234 = vunpack.c.l.b16 %v166
  %v235 = vunpack.c.l.b16 %v167
  %v236 = vunpack.c.l.b16 %v168
  %v237 = vunpack.c.l.b16 %v169
  %v238 = vunpack.c.l.b16 %v170
  %v239 = vunpack.c.l.b16 %v171
  %v240 = vunpack.c.l.b16 %v172
  %v241 = vunpack.c.l.b16 %v173
  %v242 = vunpack.c.l.b16 %v174
  %v243 = vunpack.c.l.b16 %v175
  %v244 = vunpack.c.l.b16 %v176
  %v245 = vunpack.c.l.b16 %v177
  %v246 = vunpack.c.l.b16 %v178
  %v247 = vunpack.c.l.b16 %v179
  %v248 = vunpack.c.l.b16 %v180
  %v249 = vunpack.c.l.b16 %v181
  %v250 = vunpack.c.l.b16 %v182
  %v251 = vunpack.c.l.b16 %v183
  %v252 = vunpack.c.l.b16 %v184
  %v253 = vunpack.c.l.b16 %v185
  %v254 = vpack.c.b16 %v223, %v222
  %v255 = vpack.c.b16 %v225, %v224
  %v256 = vpack.c.b16 %v227, %v226
  %v257 = vpack.c.b16 %v229, %v228
  %v258 = vpack.c.b16 %v231, %v230
  %v259 = vpack.c.b16 %v233, %v232
  %v260 = vpack.c.b16 %v235, %v234
  %v261 = vpack.c.b16 %v237, %v236
  %v262 = vpack.c.b16 %v239, %v238
  %v263 = vpack.c.b16 %v241, %v240
  %v264 = vpack.c.b16 %v243, %v242
  %v265 = vpack.c.b16 %v245, %v244
  %v266 = vpack.c.b16 %v247, %v246
  %v267 = vpack.c.b16 %v249, %v248
  %v268 = vpack.c.b16 %v251, %v250
  %v269 = vpack.c.b16 %v253, %v252
  %286 = vmatpush.bf16.msra.mxu0 %v261
  %287 = vmatpush.bf16.msra.mxu0 %v260
  %288 = vmatpush.bf16.msra.mxu0 %v259
  %289 = vmatpush.bf16.msra.mxu0 %v258
  %290 = vmatpush.bf16.msra.mxu0 %v257
  %291 = vmatpush.bf16.msra.mxu0 %v256
  %292 = vmatpush.bf16.msra.mxu0 %v255
  %293 = vmatpush.bf16.msra.mxu0 %v254
  %294 = vmatmul.bf16.gmra.mxu0 %v152
  %v295 = vpop.f32.mrf.mxu0
  %v296 = vadd.f32 %v188, %v295
  %v297 = vpop.f32.mrf.mxu0
  %298 = vdwg.mxu0
  %299 = vmatpush.bf16.msra.mxu0 %v269
  %300 = vmatpush.bf16.msra.mxu0 %v268
  %301 = vmatpush.bf16.msra.mxu0 %v267
  %302 = vmatpush.bf16.msra.mxu0 %v266
  %303 = vmatpush.bf16.msra.mxu0 %v265
  %304 = vmatpush.bf16.msra.mxu0 %v264
  %305 = vmatpush.bf16.msra.mxu0 %v263
  %306 = vmatpush.bf16.msra.mxu0 %v262
  %307 = vmatmul.bf16.gmra.mxu0 %v153
  %v308 = vpop.f32.mrf.mxu0
  %v309 = vadd.f32 %v296, %v308
  %v310 = vpop.f32.mrf.mxu0
  %311 = vdwg.mxu0
  %312 = vst [vmem:[%s5] sm:$0xff] %v309
  // Predicated region
  $region22: #{single_head_ffn_adapter.1} parent=0 // pred_check
    _
  $region23: #{single_head_ffn_adapter.1} parent=0 // pred_check_branch
    %314 = sbr.rel (0) target = $region25
  $region24: #{single_head_ffn_adapter.1} parent=0 // pred_region
    _
  $region25: #{single_head_ffn_adapter.1} parent=0 // pred_fallthru
    _
  // Predicated region
  $region26: #{single_head_ffn_adapter.1} parent=0 // pred_check
    _
  $region27: #{single_head_ffn_adapter.1} parent=0 // pred_check_branch
    %316 = sbr.rel (0) target = $region29
  $region28: #{single_head_ffn_adapter.1} parent=0 // pred_region
    _
  $region29: #{single_head_ffn_adapter.1} parent=0 // pred_fallthru
    _

</llo_original>
